<compile_context>
chip_gen: v5e
topology: v5e:2x2
jax: 0.10.0
libtpu: 0.0.40
codegen_flags: <defaults>
</compile_context>

<pallas_src>
import functools

import jax
import jax.numpy as jnp
from jax.experimental import pallas as pl
from jax.experimental.pallas import tpu as pltpu


def _focal_loss_kernel(logits_ref, tgt_ref, alpha_t_ref, out_ref, acc_ref, *,
                       gamma: float, n_total: int, block_n: int,
                       num_tiles: int, tiles_per_split: int):
    p = pl.program_id(0)            # core-split index ("parallel" axis)
    i = pl.program_id(1)            # tile index within this split ("arbitrary")
    t = p * tiles_per_split + i     # logical tile index over the whole batch

    @pl.when(i == 0)
    def _init():
        acc_ref[...] = jnp.zeros_like(acc_ref)

    native = logits_ref[...]                       # (TN, C) native dtype
    tgt = tgt_ref[...]                             # (TN, 1) int32
    alpha_t = alpha_t_ref[...]                     # (TN, 1) f32 (wrapper gather)
    tn, c = native.shape

    # Target-class gather by masked select in the NATIVE dtype (exact: one-hot).
    col = jax.lax.broadcasted_iota(jnp.int32, (tn, c), 1)
    sel = col == tgt
    logit_t = jnp.sum(jnp.where(sel, native, 0), axis=-1,
                      keepdims=True).astype(jnp.float32)            # (TN, 1)
    m = jnp.max(native, axis=-1, keepdims=True).astype(jnp.float32)  # (TN, 1)

    # Numerically-stable log-sum-exp in f32 (single exp pass over the tile).
    ex = jnp.exp(native.astype(jnp.float32) - m)                     # (TN, C)
    sum_ex = jnp.sum(ex, axis=-1, keepdims=True)                     # (TN, 1)

    ce = jnp.maximum(m + jnp.log(sum_ex) - logit_t, 0.0)             # (TN, 1)
    pt = jnp.exp(-ce)                                                # (TN, 1) <= 1

    one_minus_pt = jnp.maximum(1.0 - pt, 0.0)
    g = float(gamma)
    if g == int(g) and 0 <= int(g) <= 8:
        # Small integer gamma -> plain VPU multiplies (frees the EUP slot).
        w = jnp.ones_like(one_minus_pt)
        for _ in range(int(g)):
            w = w * one_minus_pt
    else:
        w = jnp.power(one_minus_pt, g)

    contrib = alpha_t * w * ce                                       # (TN, 1)

    # Only the last data tile can be ragged; tiles past the data range (possible
    # when the core split does not divide num_tiles evenly) are clamped re-reads
    # of the last tile and must contribute zero. Everything else takes the fast
    # path with no per-row masking work.
    needs_mask = t >= (num_tiles - 1)

    @pl.when(jnp.logical_not(needs_mask))
    def _accum_full():
        acc_ref[...] += jnp.sum(contrib, axis=0, keepdims=True)

    @pl.when(needs_mask)
    def _accum_masked():
        row = t * block_n + jax.lax.broadcasted_iota(jnp.int32, (tn, 1), 0)
        acc_ref[...] += jnp.sum(jnp.where(row < n_total, contrib, 0.0),
                                axis=0, keepdims=True)

    @pl.when(i == pl.num_programs(1) - 1)
    def _finalize():
        # Per-split partial sum, broadcast into a lane-dense (8,128) block.
        out_ref[...] = jnp.broadcast_to(acc_ref[...], (8, 128))


def _vmem_capacity_bytes() -> int:
    try:
        cap = int(pltpu.get_tpu_info().vmem_capacity_bytes)
        if cap > 0:
            return cap
    except Exception:
        pass
    return 64 << 20   # conservative fallback: v7x per-TensorCore VMEM


def _pick_block_n(n: int, c: int, itemsize: int, vmem_budget: int) -> int:
    # Per-tile VMEM estimate:
    #   2 * tn*c*itemsize   double-buffered native logits tile
    #   ~4 * tn*c*4         f32 intermediates (cast/exp/select temporaries)
    #   ~32 bytes/row       (TN,1) targets + alpha_t, double-buffered
    bytes_per_row = c * (2 * itemsize + 16) + 32
    tn = vmem_budget // max(1, bytes_per_row)
    tn = max(16, (tn // 16) * 16)   # sublane-friendly for both f32 and bf16
    if n <= tn:
        return n                    # single full-dim tile is always legal
    return tn                       # multiple of 16; ragged last tile is masked


def my_focal_loss(logits: jax.Array, targets: jax.Array, alpha: jax.Array,
                  gamma: float, *, block_n: int | None = None) -> jax.Array:
    """Pallas equivalent of MyFocalLoss.forward. Returns a scalar f32 loss."""
    n, c = logits.shape
    itemsize = jnp.dtype(logits.dtype).itemsize

    vmem_cap = _vmem_capacity_bytes()
    # Sizing budget: 3/4 of reported VMEM, hard-capped at 48 MiB so tiles chosen
    # on 128 MiB parts stay safe on a 64 MiB/TC part as well.
    vmem_budget = min(vmem_cap * 3 // 4, 48 << 20)
    vmem_limit = int(min(vmem_cap * 0.85, vmem_budget + (16 << 20)))

    tn = block_n if block_n is not None else _pick_block_n(n, c, itemsize,
                                                           vmem_budget)
    tn = min(tn, n)
    num_tiles = pl.cdiv(n, tn)
    num_splits = 2 if num_tiles >= 2 else 1       # 2-way megacore split (v7x)
    tiles_per_split = pl.cdiv(num_tiles, num_splits)

    tgt2 = targets.astype(jnp.int32).reshape(n, 1)
    alpha_t = alpha.astype(jnp.float32)[targets].reshape(n, 1)

    def tile_map(p, i):
        # Clamp so every block start stays inside the array; out-of-range tiles
        # are zeroed inside the kernel.
        return (jnp.minimum(p * tiles_per_split + i, num_tiles - 1), 0)

    out = pl.pallas_call(
        functools.partial(_focal_loss_kernel, gamma=float(gamma), n_total=n,
                          block_n=tn, num_tiles=num_tiles,
                          tiles_per_split=tiles_per_split),
        out_shape=jax.ShapeDtypeStruct((num_splits * 8, 128), jnp.float32),
        grid_spec=pltpu.PrefetchScalarGridSpec(
            num_scalar_prefetch=0,
            grid=(num_splits, tiles_per_split),
            in_specs=[
                pl.BlockSpec((tn, c), tile_map),   # logits tile (native dtype)
                pl.BlockSpec((tn, 1), tile_map),   # targets tile (int32)
                pl.BlockSpec((tn, 1), tile_map),   # alpha[targets] tile (f32)
            ],
            out_specs=pl.BlockSpec((8, 128), lambda p, i: (p, 0)),
            scratch_shapes=[pltpu.VMEM((1, 1), jnp.float32)],
        ),
        compiler_params=pltpu.CompilerParams(
            dimension_semantics=("parallel", "arbitrary"),
            vmem_limit_bytes=vmem_limit),
    )(logits, tgt2, alpha_t)

    partials = out[::8, 0]                         # (num_splits,) per-core sums
    return jnp.sum(partials) / jnp.float32(n)


def _reference(logits, targets, alpha, gamma):
    # Pure-JAX reference mirroring the PyTorch module.
    logp = jax.nn.log_softmax(logits.astype(jnp.float32), axis=-1)
    ce = -jnp.take_along_axis(logp, targets[:, None].astype(jnp.int32),
                              axis=-1)[:, 0]
    pt = jnp.exp(-ce)
    focal = (1.0 - pt) ** gamma * ce
    alpha_t = alpha.astype(jnp.float32)[targets]
    return jnp.mean(alpha_t * focal)


if __name__ == "__main__":
    key = jax.random.PRNGKey(0)
    k1, k2, k3, k4, k5, k6 = jax.random.split(key, 6)

    # Case 1: small f32 problem, auto tile sizing -> single tile, single split.
    N1, C1 = 8, 32
    logits1 = jax.random.normal(k1, (N1, C1), dtype=jnp.float32)
    targets1 = jax.random.randint(k2, (N1,), 0, C1, dtype=jnp.int32)
    alpha1 = 0.25 + 0.5 * (jnp.arange(C1, dtype=jnp.float32) / C1)
    loss1 = jax.block_until_ready(my_focal_loss(logits1, targets1, alpha1, 2.0))
    ref1 = _reference(logits1, targets1, alpha1, 2.0)
    assert jnp.allclose(loss1, ref1, rtol=1e-5, atol=1e-6), (loss1, ref1)

    # Case 2: bf16 logits + forced small tile -> multi-tile, 2-way split, ragged
    # last tile and one clamped/zeroed duplicate tile on the second split.
    N2, C2 = 40, 32
    logits2 = jax.random.normal(k3, (N2, C2),
                                dtype=jnp.float32).astype(jnp.bfloat16)
    targets2 = jax.random.randint(k4, (N2,), 0, C2, dtype=jnp.int32)
    alpha2 = 0.25 + 0.5 * (jnp.arange(C2, dtype=jnp.float32) / C2)
    loss2 = jax.block_until_ready(
        my_focal_loss(logits2, targets2, alpha2, 2.0, block_n=16))
    ref2 = _reference(logits2, targets2, alpha2, 2.0)
    assert jnp.allclose(loss2, ref2, rtol=1e-4, atol=1e-5), (loss2, ref2)

    # Case 3: odd N and C, non-integer gamma (generic pow path), tile of 8.
    N3, C3 = 50, 33
    logits3 = jax.random.normal(k5, (N3, C3), dtype=jnp.float32)
    targets3 = jax.random.randint(k6, (N3,), 0, C3, dtype=jnp.int32)
    alpha3 = jnp.linspace(0.1, 0.9, C3, dtype=jnp.float32)
    loss3 = jax.block_until_ready(
        my_focal_loss(logits3, targets3, alpha3, 1.5, block_n=8))
    ref3 = _reference(logits3, targets3, alpha3, 1.5)
    assert jnp.allclose(loss3, ref3, rtol=1e-5, atol=1e-6), (loss3, ref3)

    print("KERNEL_OK")
</pallas_src>

<mosaic_0001>
module attributes {stable_mosaic.version = 11 : i64} {
  func.func @_focal_loss_kernel(%arg0: i32, %arg1: i32, %arg2: memref<8x32xf32, #tpu.memory_space<vmem>>, %arg3: memref<8x1xi32, #tpu.memory_space<vmem>>, %arg4: memref<8x1xf32, #tpu.memory_space<vmem>>, %arg5: memref<8x128xf32, #tpu.memory_space<vmem>>, %arg6: memref<1x1xf32, #tpu.memory_space<vmem>>) attributes {dimension_semantics = [#tpu.dimension_semantics<parallel>, #tpu.dimension_semantics<arbitrary>], iteration_bounds = array<i64: 1, 1>, scalar_prefetch = 0 : i64, scratch_operands = 1 : i64, tpu.core_type = #tpu.core_type<tc>, window_params = [{transform_indices = @transform_0, window_bounds = array<i64: 8, 32>}, {transform_indices = @transform_1, window_bounds = array<i64: 8, 1>}, {transform_indices = @transform_2, window_bounds = array<i64: 8, 1>}, {transform_indices = @transform_3, window_bounds = array<i64: 8, 128>}]} {
    %c1_i32 = arith.constant 1 : i32
    %0 = arith.muli %arg0, %c1_i32 : i32
    %1 = arith.addi %0, %arg1 : i32
    %c0_i32 = arith.constant 0 : i32
    %2 = arith.cmpi eq, %arg1, %c0_i32 : i32
    %3 = arith.extui %2 : i1 to i32
    %c0_i32_0 = arith.constant 0 : i32
    %4 = arith.cmpi ne, %3, %c0_i32_0 : i32
    scf.if %4 {
      %cst_19 = arith.constant 0.000000e+00 : f32
      %49 = vector.broadcast %cst_19 : f32 to vector<1x1xf32>
      %c0_20 = arith.constant 0 : index
      %c0_21 = arith.constant 0 : index
      %50 = vector.load %arg6[%c0_20, %c0_21] : memref<1x1xf32, #tpu.memory_space<vmem>>, vector<1x1xf32>
      tpu.vector_store %arg6[%c0_20, %c0_21], %49 {strides = array<i32>} : memref<1x1xf32, #tpu.memory_space<vmem>>, vector<1x1xf32>,
    } else {
    }
    %c0 = arith.constant 0 : index
    %c0_1 = arith.constant 0 : index
    %5 = vector.load %arg2[%c0, %c0_1] : memref<8x32xf32, #tpu.memory_space<vmem>>, vector<8x32xf32>
    %c0_2 = arith.constant 0 : index
    %c0_3 = arith.constant 0 : index
    %6 = vector.load %arg3[%c0_2, %c0_3] : memref<8x1xi32, #tpu.memory_space<vmem>>, vector<8x1xi32>
    %c0_4 = arith.constant 0 : index
    %c0_5 = arith.constant 0 : index
    %7 = vector.load %arg4[%c0_4, %c0_5] : memref<8x1xf32, #tpu.memory_space<vmem>>, vector<8x1xf32>
    %8 = tpu.iota {dimensions = array<i32: 1>} : vector<8x32xi32>
    %9 = vector.broadcast %6 : vector<8x1xi32> to vector<8x32xi32>
    %10 = arith.cmpi eq, %8, %9 : vector<8x32xi32>
    %c0_i32_6 = arith.constant 0 : i32
    %11 = arith.sitofp %c0_i32_6 : i32 to f32
    %12 = vector.broadcast %11 : f32 to vector<8x32xf32>
    %13 = arith.select %10, %5, %12 : vector<8x32xi1>, vector<8x32xf32>
    %cst = arith.constant dense<0.000000e+00> : vector<8xf32>
    %14 = vector.multi_reduction <add>, %13, %cst [1] : vector<8x32xf32> to vector<8xf32>
    %15 = vector.shape_cast %14 : vector<8xf32> to vector<8x1xf32>
    %cst_7 = arith.constant dense<0xFF800000> : vector<8xf32>
    %16 = vector.multi_reduction <maximumf>, %5, %cst_7 [1] : vector<8x32xf32> to vector<8xf32>
    %17 = vector.shape_cast %16 : vector<8xf32> to vector<8x1xf32>
    %18 = vector.broadcast %17 : vector<8x1xf32> to vector<8x32xf32>
    %19 = arith.subf %5, %18 : vector<8x32xf32>
    %20 = math.exp %19 : vector<8x32xf32>
    %cst_8 = arith.constant dense<0.000000e+00> : vector<8xf32>
    %21 = vector.multi_reduction <add>, %20, %cst_8 [1] : vector<8x32xf32> to vector<8xf32>
    %22 = vector.shape_cast %21 : vector<8xf32> to vector<8x1xf32>
    %23 = math.log %22 : vector<8x1xf32>
    %24 = arith.addf %17, %23 : vector<8x1xf32>
    %25 = arith.subf %24, %15 : vector<8x1xf32>
    %cst_9 = arith.constant 0.000000e+00 : f32
    %26 = vector.broadcast %cst_9 : f32 to vector<8x1xf32>
    %27 = arith.maximumf %25, %26 : vector<8x1xf32>
    %cst_10 = arith.constant 0.000000e+00 : f32
    %28 = vector.broadcast %cst_10 : f32 to vector<8x1xf32>
    %29 = arith.subf %28, %27 : vector<8x1xf32>
    %30 = math.exp %29 : vector<8x1xf32>
    %cst_11 = arith.constant 1.000000e+00 : f32
    %31 = vector.broadcast %cst_11 : f32 to vector<8x1xf32>
    %32 = arith.subf %31, %30 : vector<8x1xf32>
    %cst_12 = arith.constant 0.000000e+00 : f32
    %33 = vector.broadcast %cst_12 : f32 to vector<8x1xf32>
    %34 = arith.maximumf %32, %33 : vector<8x1xf32>
    %cst_13 = arith.constant 1.000000e+00 : f32
    %35 = vector.broadcast %cst_13 : f32 to vector<8x1xf32>
    %36 = arith.mulf %35, %34 : vector<8x1xf32>
    %37 = arith.mulf %36, %34 : vector<8x1xf32>
    %38 = arith.mulf %7, %37 : vector<8x1xf32>
    %39 = arith.mulf %38, %27 : vector<8x1xf32>
    %c0_i32_14 = arith.constant 0 : i32
    %40 = arith.cmpi sge, %1, %c0_i32_14 : i32
    %true = arith.constant true
    %41 = arith.xori %40, %true : i1
    %42 = arith.extui %41 : i1 to i32
    %c0_i32_15 = arith.constant 0 : i32
    %43 = arith.cmpi ne, %42, %c0_i32_15 : i32
    scf.if %43 {
      %c0_19 = arith.constant 0 : index
      %c0_20 = arith.constant 0 : index
      %49 = vector.load %arg6[%c0_19, %c0_20] : memref<1x1xf32, #tpu.memory_space<vmem>>, vector<1x1xf32>
      %cst_21 = arith.constant dense<0.000000e+00> : vector<1xf32>
      %50 = vector.multi_reduction <add>, %39, %cst_21 [0] : vector<8x1xf32> to vector<1xf32>
      %51 = vector.shape_cast %50 : vector<1xf32> to vector<1x1xf32>
      %52 = arith.addf %49, %51 : vector<1x1xf32>
      %c0_22 = arith.constant 0 : index
      %c0_23 = arith.constant 0 : index
      %53 = vector.load %arg6[%c0_22, %c0_23] : memref<1x1xf32, #tpu.memory_space<vmem>>, vector<1x1xf32>
      tpu.vector_store %arg6[%c0_22, %c0_23], %52 {strides = array<i32>} : memref<1x1xf32, #tpu.memory_space<vmem>>, vector<1x1xf32>,
    } else {
    }
    %44 = arith.extui %40 : i1 to i32
    %c0_i32_16 = arith.constant 0 : i32
    %45 = arith.cmpi ne, %44, %c0_i32_16 : i32
    scf.if %45 {
      %c8_i32 = arith.constant 8 : i32
      %49 = arith.muli %1, %c8_i32 : i32
      %50 = tpu.iota {dimensions = array<i32: 0>} : vector<8x1xi32>
      %51 = vector.broadcast %49 : i32 to vector<8x1xi32>
      %52 = arith.addi %51, %50 : vector<8x1xi32>
      %c0_19 = arith.constant 0 : index
      %c0_20 = arith.constant 0 : index
      %53 = vector.load %arg6[%c0_19, %c0_20] : memref<1x1xf32, #tpu.memory_space<vmem>>, vector<1x1xf32>
      %c8_i32_21 = arith.constant 8 : i32
      %54 = vector.broadcast %c8_i32_21 : i32 to vector<8x1xi32>
      %55 = arith.cmpi slt, %52, %54 : vector<8x1xi32>
      %cst_22 = arith.constant 0.000000e+00 : f32
      %56 = vector.broadcast %cst_22 : f32 to vector<8x1xf32>
      %57 = arith.select %55, %39, %56 : vector<8x1xi1>, vector<8x1xf32>
      %cst_23 = arith.constant dense<0.000000e+00> : vector<1xf32>
      %58 = vector.multi_reduction <add>, %57, %cst_23 [0] : vector<8x1xf32> to vector<1xf32>
      %59 = vector.shape_cast %58 : vector<1xf32> to vector<1x1xf32>
      %60 = arith.addf %53, %59 : vector<1x1xf32>
      %c0_24 = arith.constant 0 : index
      %c0_25 = arith.constant 0 : index
      %61 = vector.load %arg6[%c0_24, %c0_25] : memref<1x1xf32, #tpu.memory_space<vmem>>, vector<1x1xf32>
      tpu.vector_store %arg6[%c0_24, %c0_25], %60 {strides = array<i32>} : memref<1x1xf32, #tpu.memory_space<vmem>>, vector<1x1xf32>,
    } else {
    }
    %c0_i32_17 = arith.constant 0 : i32
    %46 = arith.cmpi eq, %arg1, %c0_i32_17 : i32
    %47 = arith.extui %46 : i1 to i32
    %c0_i32_18 = arith.constant 0 : i32
    %48 = arith.cmpi ne, %47, %c0_i32_18 : i32
    scf.if %48 {
      %c0_19 = arith.constant 0 : index
      %c0_20 = arith.constant 0 : index
      %49 = vector.load %arg6[%c0_19, %c0_20] : memref<1x1xf32, #tpu.memory_space<vmem>>, vector<1x1xf32>
      %50 = vector.shape_cast %49 : vector<1x1xf32> to vector<1x1xf32>
      %51 = vector.broadcast %50 : vector<1x1xf32> to vector<8x128xf32>
      %c0_21 = arith.constant 0 : index
      %c0_22 = arith.constant 0 : index
      %52 = vector.load %arg5[%c0_21, %c0_22] : memref<8x128xf32, #tpu.memory_space<vmem>>, vector<8x128xf32>
      tpu.vector_store %arg5[%c0_21, %c0_22], %51 {strides = array<i32>} : memref<8x128xf32, #tpu.memory_space<vmem>>, vector<8x128xf32>,
    } else {
    }
    return
  }
  func.func @transform_0(%arg0: i32, %arg1: i32) -> (i32, i32) {
    %c1_i32 = arith.constant 1 : i32
    %0 = arith.muli %arg0, %c1_i32 : i32
    %1 = arith.addi %0, %arg1 : i32
    %c0_i32 = arith.constant 0 : i32
    %2 = arith.minsi %1, %c0_i32 : i32
    %c0_i32_0 = arith.constant 0 : i32
    %c0_i32_1 = arith.constant 0 : i32
    return %2, %c0_i32_0 : i32, i32
  }
  func.func @transform_1(%arg0: i32, %arg1: i32) -> (i32, i32) {
    %c1_i32 = arith.constant 1 : i32
    %0 = arith.muli %arg0, %c1_i32 : i32
    %1 = arith.addi %0, %arg1 : i32
    %c0_i32 = arith.constant 0 : i32
    %2 = arith.minsi %1, %c0_i32 : i32
    %c0_i32_0 = arith.constant 0 : i32
    %c0_i32_1 = arith.constant 0 : i32
    return %2, %c0_i32_0 : i32, i32
  }
  func.func @transform_2(%arg0: i32, %arg1: i32) -> (i32, i32) {
    %c1_i32 = arith.constant 1 : i32
    %0 = arith.muli %arg0, %c1_i32 : i32
    %1 = arith.addi %0, %arg1 : i32
    %c0_i32 = arith.constant 0 : i32
    %2 = arith.minsi %1, %c0_i32 : i32
    %c0_i32_0 = arith.constant 0 : i32
    %c0_i32_1 = arith.constant 0 : i32
    return %2, %c0_i32_0 : i32, i32
  }
  func.func @transform_3(%arg0: i32, %arg1: i32) -> (i32, i32) {
    %c0_i32 = arith.constant 0 : i32
    %c0_i32_0 = arith.constant 0 : i32
    return %arg0, %c0_i32 : i32, i32
  }
}

</mosaic_0001>

<llo_original>
// kernel: tpu_custom_call.1
$region0: #{tpu_custom_call.1}
  #allocation0 [shape = 'u32[]', space=smem, size = 0x4, offset = 0x4, fixed_abs, tag = 'smem constant byte address 0x4 - core index']
  #allocation1 [shape = 'u32[72,128]{1,0:T(1,128)}', space=vmem, size = 0x9000, scoped, tag = 'internal scratch']
  #allocation2 [shape = 'f32[1,1]{1,0:T(1,128)}', space=vmem, size = 0x200, scoped, tag = 'scratch operand']
  %s0 = inlined_call_operand.vmem [shape: f32[8,32], index: 0, kind: input, shape index: {}]
  %s1 = inlined_call_operand.vmem [shape: s32[8,1], index: 1, kind: input, shape index: {}]
  %s2 = inlined_call_operand.vmem [shape: f32[8,1], index: 2, kind: input, shape index: {}]
  %s3 = inlined_call_operand.hbm [shape: f32[8,128], index: 3, kind: output, shape index: {}]
  %s4 = sld [smem:[#allocation0]]
  $region38: #{tpu_custom_call.1} parent=0
    _
  %s6 = ssub.s32 1, %s4
  %s7 = scalar_select 0, %s6, %s4
  $region1: #{tpu_custom_call.1} parent=0
    #allocation3 [shape = 'u8[4096]{0}', space=vmem, size = 0x1000, scoped, tag = 'output window, operand 0, single buffered']
    #allocation4 [shape = 's32[1]{0}', space=sflag, size = 0x4, scoped, tag = 'scoped memory for tpu_custom_call.1']
    %8 = vsyncpa [#allocation4], 0
    // Predicated region
    $region2: #{tpu_custom_call.1} parent=1 // pred_check
      _
    $region3: #{tpu_custom_call.1} parent=1 // pred_check_branch
      %10 = sbr.rel (0) target = $region5
    $region4: #{tpu_custom_call.1} parent=1 // pred_region
      %s11 = sadd.s32 0, 0
      %p12 = scmp.lt.s32.totalorder %s11, 0
      %s13 = scalar_select %p12, %s11, 0
      %p14 = scmp.lt.s32.totalorder %s13, 0
      %s15 = scalar_select %p14, %s13, 0
      %s16 = smul.addr %s15, 8
      %s17 = scalar_lea.vmem %s0, %s16
      %s18 = sadd.s32 0, 0
      %p19 = scmp.lt.s32.totalorder %s18, 0
      %s20 = scalar_select %p19, %s18, 0
    $region5: #{tpu_custom_call.1} parent=1 // pred_fallthru
      _
    // Predicated region
    $region6: #{tpu_custom_call.1} parent=1 // pred_check
      _
    $region7: #{tpu_custom_call.1} parent=1 // pred_check_branch
      %22 = sbr.rel (0) target = $region9
    $region8: #{tpu_custom_call.1} parent=1 // pred_region
      %s23 = sadd.s32 0, 0
      %p24 = scmp.lt.s32.totalorder %s23, 0
      %s25 = scalar_select %p24, %s23, 0
      %p26 = scmp.lt.s32.totalorder %s25, 0
      %s27 = scalar_select %p26, %s25, 0
      %s28 = smul.addr %s27, 8
      %s29 = scalar_lea.vmem %s1, %s28
      %s30 = sadd.s32 0, 0
      %p31 = scmp.lt.s32.totalorder %s30, 0
      %s32 = scalar_select %p31, %s30, 0
    $region9: #{tpu_custom_call.1} parent=1 // pred_fallthru
      _
    // Predicated region
    $region10: #{tpu_custom_call.1} parent=1 // pred_check
      _
    $region11: #{tpu_custom_call.1} parent=1 // pred_check_branch
      %34 = sbr.rel (0) target = $region13
    $region12: #{tpu_custom_call.1} parent=1 // pred_region
      %s35 = sadd.s32 0, 0
      %p36 = scmp.lt.s32.totalorder %s35, 0
      %s37 = scalar_select %p36, %s35, 0
      %p38 = scmp.lt.s32.totalorder %s37, 0
      %s39 = scalar_select %p38, %s37, 0
      %s40 = smul.addr %s39, 8
      %s41 = scalar_lea.vmem %s2, %s40
      %s42 = sadd.s32 0, 0
      %p43 = scmp.lt.s32.totalorder %s42, 0
      %s44 = scalar_select %p43, %s42, 0
    $region13: #{tpu_custom_call.1} parent=1 // pred_fallthru
      _
    %s45 = sadd.s32 0, 0
    %p46 = scmp.lt.s32.totalorder %s45, 0
    %s47 = scalar_select %p46, %s45, 0
    %p48 = scmp.lt.s32.totalorder %s47, 0
    %s49 = scalar_select %p48, %s47, 0
    %s50 = smul.addr %s49, 8
    %s51 = scalar_lea.vmem %s0, %s50
    %s52 = sadd.s32 0, 0
    %p53 = scmp.lt.s32.totalorder %s52, 0
    %s54 = scalar_select %p53, %s52, 0
    %p55 = scmp.lt.s32.totalorder %s54, 0
    %s56 = scalar_select %p55, %s54, 0
    %s57 = smul.addr %s56, 8
    %s58 = scalar_lea.vmem %s1, %s57
    %s59 = sadd.s32 0, 0
    %p60 = scmp.lt.s32.totalorder %s59, 0
    %s61 = scalar_select %p60, %s59, 0
    %p62 = scmp.lt.s32.totalorder %s61, 0
    %s63 = scalar_select %p62, %s61, 0
    %s64 = smul.addr %s63, 8
    %s65 = scalar_lea.vmem %s2, %s64
    %s66 = sadd.s32 0, 0
    %p67 = scmp.lt.s32.totalorder %s66, 0
    %s68 = scalar_select %p67, %s66, 0
    %p69 = scmp.lt.s32.totalorder %s68, 0
    %s70 = scalar_select %p69, %s68, 0
    %s71 = smul.addr %s70, 8
    %s72 = scalar_lea.vmem %s0, %s71
    %s73 = sadd.s32 0, 0
    %p74 = scmp.lt.s32.totalorder %s73, 0
    %s75 = scalar_select %p74, %s73, 0
    %s76 = sadd.s32 0, 0
    %p77 = scmp.lt.s32.totalorder %s76, 0
    %s78 = scalar_select %p77, %s76, 0
    %p79 = scmp.lt.s32.totalorder %s78, 0
    %s80 = scalar_select %p79, %s78, 0
    %s81 = smul.addr %s80, 8
    %s82 = scalar_lea.vmem %s1, %s81
    %s83 = sadd.s32 0, 0
    %p84 = scmp.lt.s32.totalorder %s83, 0
    %s85 = scalar_select %p84, %s83, 0
    %s86 = sadd.s32 0, 0
    %p87 = scmp.lt.s32.totalorder %s86, 0
    %s88 = scalar_select %p87, %s86, 0
    %p89 = scmp.lt.s32.totalorder %s88, 0
    %s90 = scalar_select %p89, %s88, 0
    %s91 = smul.addr %s90, 8
    %s92 = scalar_lea.vmem %s2, %s91
    %s93 = sadd.s32 0, 0
    %p94 = scmp.lt.s32.totalorder %s93, 0
    %s95 = scalar_select %p94, %s93, 0
    %s96 = sadd.s32 0, 0
    %p97 = scmp.eq.s32.totalorder 0, 0
    // Predicated region
    $region14: #{tpu_custom_call.1} parent=1 // pred_check
      %p98 = pneg %p97
    $region15: #{tpu_custom_call.1} parent=1 // pred_check_branch
      %100 = sbr.rel (%p98) target = $region17
    $region16: #{tpu_custom_call.1} parent=1 // pred_region
      %vm101 = vcmask 0
      %102 = vst.msk [vmem:[#allocation2] sm:$0x1] %vm101, 0.0
    $region17: #{tpu_custom_call.1} parent=1 // pred_fallthru
      _
    %v103 = vld [vmem:[%s72] sm:$0xff]
    %v104 = vld [vmem:[%s82] sm:$0xff]
    %v105 = vld [vmem:[%s92] sm:$0xff]
    %v106 = vlaneseq
    %v107 = vand.u32 %v106, 127
    %108 = vset.pattern.permute.xlu0 0
    %109 = vperm.xlu0 %108, %v104
    %v110 = vpop.permute.xlu0 %109
    %vm111 = vcmp.eq.s32.totalorder %v107, %v110
    %v112 = vsel %vm111, %v103, 0.0
    %vm113 = vcmask 261120
    %v114 = vsel %vm113, %v112, 0.0
    %115 = vadd.xlane.f32.xlu0 %v114
    %v116 = vpop.xlane.xlu0 %115
    %v117 = vsel %vm113, %v103, -inf
    %118 = vmax.xlane.f32.xlu0 %v117
    %v119 = vpop.xlane.xlu0 %118
    %v120 = vsub.f32 %v103, %v119
    %v121 = vmul.f32 %v120, 1.442695
    %v122 = vpow.pop %v121
    %v123 = vsel %vm113, %v122, 0.0
    %124 = vadd.xlane.f32.xlu0 %v123
    %v125 = vpop.xlane.xlu0 %124
    %v126 = vlog2.pop %v125
    %v127 = vmul.f32 %v126, 0.6931472
    %v128 = vadd.f32 %v119, %v127
    %v129 = vsub.f32 %v128, %v116
    %v130 = vmax.f32 %v129, 0.0
    %v131 = vsub.f32 0.0, %v130
    %v132 = vmul.f32 %v131, 1.442695
    %v133 = vpow.pop %v132
    %v134 = vsub.f32 1.0, %v133
    %v135 = vmax.f32 %v134, 0.0
    %v136 = vmul.f32 %v135, %v135
    %v137 = vmul.f32 %v105, %v136
    %v138 = vmul.f32 %v137, %v130
    %p139 = scmp.ge.s32.totalorder %s96, 0
    %p140 = scmp.lt.s32.totalorder %s96, 0
    // Predicated region
    $region18: #{tpu_custom_call.1} parent=1 // pred_check
      %p141 = pneg %p140
    $region19: #{tpu_custom_call.1} parent=1 // pred_check_branch
      %143 = sbr.rel (%p141) target = $region21
    $region20: #{tpu_custom_call.1} parent=1 // pred_region
      %v144 = vld [vmem:[#allocation2] sm:$0x1]
      %vm145 = vcmask 7168
      %v146 = vsel %vm145, %v138, 0.0
      %v147 = vrot.slane %v146, 4
      %v148 = vadd.f32 %v146, %v147
      %v149 = vrot.slane %v148, 2
      %v150 = vadd.f32 %v148, %v149
      %v151 = vrot.slane %v150, 1
      %v152 = vadd.f32 %v150, %v151
      %v153 = vadd.f32 %v144, %v152
      %vm154 = vcmask 0
      %155 = vst.msk [vmem:[#allocation2] sm:$0x1] %vm154, %v153
    $region21: #{tpu_custom_call.1} parent=1 // pred_fallthru
      _
    // Predicated region
    $region22: #{tpu_custom_call.1} parent=1 // pred_check
      %p156 = pneg %p139
    $region23: #{tpu_custom_call.1} parent=1 // pred_check_branch
      %158 = sbr.rel (%p156) target = $region25
    $region24: #{tpu_custom_call.1} parent=1 // pred_region
      %s159 = smul.u32 %s96, 8
      %v160 = vlaneseq
      %v161 = vshrl.u32 %v160, 7
      %v162 = vstv %s159
      %v163 = vadd.s32 %v162, %v161
      %v164 = vld [vmem:[#allocation2] sm:$0x1]
      %vm165 = vcmp.lt.s32.totalorder %v163, 8
      %v166 = vsel %vm165, %v138, 0.0
      %vm167 = vcmask 7168
      %v168 = vsel %vm167, %v166, 0.0
      %v169 = vrot.slane %v168, 4
      %v170 = vadd.f32 %v168, %v169
      %v171 = vrot.slane %v170, 2
      %v172 = vadd.f32 %v170, %v171
      %v173 = vrot.slane %v172, 1
      %v174 = vadd.f32 %v172, %v173
      %v175 = vadd.f32 %v164, %v174
      %vm176 = vcmask 0
      %177 = vst.msk [vmem:[#allocation2] sm:$0x1] %vm176, %v175
    $region25: #{tpu_custom_call.1} parent=1 // pred_fallthru
      _
    // Predicated region
    $region26: #{tpu_custom_call.1} parent=1 // pred_check
      %p178 = pneg %p97
    $region27: #{tpu_custom_call.1} parent=1 // pred_check_branch
      %180 = sbr.rel (%p178) target = $region29
    $region28: #{tpu_custom_call.1} parent=1 // pred_region
      %v181 = vld [vmem:[#allocation2] sm:$0x1]
      %v183 = vperm.slane %v181, 0
      %184 = vset.pattern.permute.xlu0 0
      %185 = vperm.xlu0 %184, %v183
      %v186 = vpop.permute.xlu0 %185
      %188 = vst [vmem:[#allocation3] sm:$0xff] %v186
    $region29: #{tpu_custom_call.1} parent=1 // pred_fallthru
      _
    // Predicated region
    $region30: #{tpu_custom_call.1} parent=1 // pred_check
      _
    $region31: #{tpu_custom_call.1} parent=1 // pred_check_branch
      %190 = sbr.rel (0) target = $region33
    $region32: #{tpu_custom_call.1} parent=1 // pred_region
      %192 = vsyncadd [#allocation4], 0
      %s194 = sshll.u32 [#allocation3], 4
      %s195 = int_to_ptr.vmem [resolvable:$true] %s194
      %s196 = sshll.u32 %s3, 4
      %s197 = int_to_ptr.hbm [resolvable:$true] %s196
      %199 = dma.vmem_to_hbm [thread:$0]  %s195, 128, %s197, [#allocation4]
    $region33: #{tpu_custom_call.1} parent=1 // pred_fallthru
      _
    // Predicated region
    $region34: #{tpu_custom_call.1} parent=1 // pred_check
      _
    $region35: #{tpu_custom_call.1} parent=1 // pred_check_branch
      %201 = sbr.rel (0) target = $region37
    $region36: #{tpu_custom_call.1} parent=1 // pred_region
      %203 = dma.done [#allocation4], 128
    $region37: #{tpu_custom_call.1} parent=1 // pred_fallthru
      _
    %204 = vsyncpa [#allocation4], 1

</llo_original>
